<compile_context>
chip_gen: v6e
topology: v6e:2x2x1
jax: 0.10.0
libtpu: 0.0.40
codegen_flags: <defaults>
</compile_context>

<pallas_src>
import jax
import jax.numpy as jnp
from jax.experimental import pallas as pl
from jax.experimental.pallas import tpu as pltpu

_BN_EPS = 1e-5  # PyTorch BatchNorm1d default eps


def _pick_feature_tile(d_out: int) -> int:
    """Lane-dense tile over output features; full dim when small / unaligned."""
    if d_out % 128 == 0:
        for cand in (512, 384, 256, 128):
            if d_out % cand == 0:
                return cand
    return d_out


def _gated_layer_kernel(z_ref, wl_ref, bl_ref, wg_ref, bg_ref, gm_ref, bt_ref, o_ref):
    """Fused hidden layer: linear, gate-linear, BatchNorm(train), ReLU, Gate."""
    z = z_ref[...]
    z_pre = jnp.dot(z, wl_ref[...], preferred_element_type=jnp.float32) + bl_ref[...]
    g = jnp.dot(z, wg_ref[...], preferred_element_type=jnp.float32) + bg_ref[...]

    # BatchNorm1d, training-mode batch statistics (biased variance), per feature.
    mean = jnp.mean(g, axis=0, keepdims=True)
    var = jnp.mean((g - mean) * (g - mean), axis=0, keepdims=True)
    g = (g - mean) * jax.lax.rsqrt(var + _BN_EPS)
    g = g * gm_ref[...] + bt_ref[...]

    g = jnp.maximum(g, 0.0)  # ReLU

    # Gate module: h * g — fused here with its producers (no HBM round trip).
    # TODO(synk): F.dropout(p=0.5, training=True) in the PyTorch forward is
    # stochastic; it is applied as identity (inference semantics) here.
    o_ref[...] = (z_pre * g).astype(o_ref.dtype)


def _reconstruction_kernel(z_ref, w_ref, b_ref, o_ref):
    """Fused reconstruction layer: linear + tanh."""
    y = jnp.dot(z_ref[...], w_ref[...], preferred_element_type=jnp.float32) + b_ref[...]
    o_ref[...] = jnp.tanh(y).astype(o_ref.dtype)


def gated_hidden_layer(z, w_lin, b_lin, w_gate, b_gate, gamma, beta):
    b, d_in = z.shape
    d_out = w_lin.shape[1]
    tn = _pick_feature_tile(d_out)
    grid = (d_out // tn,)

    mat_spec = pl.BlockSpec((d_in, tn), lambda j: (0, j))
    vec_spec = pl.BlockSpec((1, tn), lambda j: (0, j))

    return pl.pallas_call(
        _gated_layer_kernel,
        out_shape=jax.ShapeDtypeStruct((b, d_out), z.dtype),
        grid_spec=pltpu.PrefetchScalarGridSpec(
            num_scalar_prefetch=0,
            grid=grid,
            in_specs=[
                pl.BlockSpec((b, d_in), lambda j: (0, 0)),  # z (resident across grid)
                mat_spec,                                   # W_lin
                vec_spec,                                   # b_lin
                mat_spec,                                   # W_gate
                vec_spec,                                   # b_gate
                vec_spec,                                   # gamma
                vec_spec,                                   # beta
            ],
            out_specs=pl.BlockSpec((b, tn), lambda j: (0, j)),
        ),
        compiler_params=pltpu.CompilerParams(
            dimension_semantics=("parallel",),
        ),
    )(z, w_lin, b_lin, w_gate, b_gate, gamma, beta)


def reconstruction_layer(z, w, bias):
    b, d_in = z.shape
    d_out = w.shape[1]
    tn = _pick_feature_tile(d_out)
    grid = (d_out // tn,)

    return pl.pallas_call(
        _reconstruction_kernel,
        out_shape=jax.ShapeDtypeStruct((b, d_out), z.dtype),
        grid_spec=pltpu.PrefetchScalarGridSpec(
            num_scalar_prefetch=0,
            grid=grid,
            in_specs=[
                pl.BlockSpec((b, d_in), lambda j: (0, 0)),
                pl.BlockSpec((d_in, tn), lambda j: (0, j)),
                pl.BlockSpec((1, tn), lambda j: (0, j)),
            ],
            out_specs=pl.BlockSpec((b, tn), lambda j: (0, j)),
        ),
        compiler_params=pltpu.CompilerParams(
            dimension_semantics=("parallel",),
        ),
    )(z, w, bias)


def decoder_forward(z, params, y=None):
    """Pallas forward pass matching Decoder.forward (dropout as identity)."""
    if y is not None and y.shape[-1] > 0:
        z = jnp.concatenate([z, y], axis=1)
    for (wl, bl, wg, bg, gamma, beta) in params["hidden"]:
        z = gated_hidden_layer(z, wl, bl, wg, bg, gamma, beta)
    wr, br = params["reconstruction"]
    return reconstruction_layer(z, wr, br)


# ----------------------------- reference & init -----------------------------

def decoder_reference(z, params, y=None):
    """Pure-JAX reference with identical semantics."""
    if y is not None and y.shape[-1] > 0:
        z = jnp.concatenate([z, y], axis=1)
    for (wl, bl, wg, bg, gamma, beta) in params["hidden"]:
        z_pre = jnp.dot(z, wl, precision=jax.lax.Precision.HIGHEST) + bl
        g = jnp.dot(z, wg, precision=jax.lax.Precision.HIGHEST) + bg
        mean = jnp.mean(g, axis=0, keepdims=True)
        var = jnp.mean((g - mean) ** 2, axis=0, keepdims=True)
        g = (g - mean) / jnp.sqrt(var + _BN_EPS)
        g = g * gamma + beta
        g = jnp.maximum(g, 0.0)
        z = z_pre * g
    wr, br = params["reconstruction"]
    return jnp.tanh(jnp.dot(z, wr, precision=jax.lax.Precision.HIGHEST) + br)


def init_decoder_params(key, z_dim, h_dim, input_size, num_classes=0, a_dim=0):
    neurons = [z_dim + num_classes + a_dim, *h_dim]
    hidden = []
    for i in range(1, len(neurons)):
        d_in, d_out = neurons[i - 1], neurons[i]
        key, k1, k2, k3, k4, k5, k6 = jax.random.split(key, 7)
        scale = float(d_in) ** -0.5
        wl = jax.random.uniform(k1, (d_in, d_out), jnp.float32, -scale, scale)
        bl = jax.random.uniform(k2, (1, d_out), jnp.float32, -scale, scale)
        wg = jax.random.uniform(k3, (d_in, d_out), jnp.float32, -scale, scale)
        bg = jax.random.uniform(k4, (1, d_out), jnp.float32, -scale, scale)
        gamma = 1.0 + 0.1 * jax.random.normal(k5, (1, d_out), jnp.float32)
        beta = 0.1 * jax.random.normal(k6, (1, d_out), jnp.float32)
        hidden.append((wl, bl, wg, bg, gamma, beta))
    key, k1, k2 = jax.random.split(key, 3)
    d_in = neurons[-1]
    scale = float(d_in) ** -0.5
    wr = jax.random.uniform(k1, (d_in, input_size), jnp.float32, -scale, scale)
    br = jax.random.uniform(k2, (1, input_size), jnp.float32, -scale, scale)
    return {"hidden": hidden, "reconstruction": (wr, br)}


if __name__ == "__main__":
    key = jax.random.PRNGKey(0)
    k_z, k_p = jax.random.split(key)

    # Small shapes consistent with the module: batch=16, z_dim=8,
    # hidden dims (32, 64), reconstructed input_size=64, num_classes=0.
    B, Z_DIM, H_DIM, INPUT_SIZE = 16, 8, (32, 64), 64

    z = jax.random.normal(k_z, (B, Z_DIM), dtype=jnp.float32)
    params = init_decoder_params(k_p, Z_DIM, H_DIM, INPUT_SIZE)

    out = decoder_forward(z, params)
    out = jax.block_until_ready(out)

    ref = decoder_reference(z, params)
    assert out.shape == ref.shape == (B, INPUT_SIZE)
    assert out.dtype == ref.dtype
    max_err = float(jnp.max(jnp.abs(out - ref)))
    assert jnp.allclose(out, ref, atol=2e-3, rtol=2e-3), max_err

    print("KERNEL_OK")
</pallas_src>

<mosaic_0001>
module attributes {stable_mosaic.version = 11 : i64} {
  func.func @_gated_layer_kernel(%arg0: i32, %arg1: memref<16x8xf32, #tpu.memory_space<vmem>>, %arg2: memref<8x32xf32, #tpu.memory_space<vmem>>, %arg3: memref<1x32xf32, #tpu.memory_space<vmem>>, %arg4: memref<8x32xf32, #tpu.memory_space<vmem>>, %arg5: memref<1x32xf32, #tpu.memory_space<vmem>>, %arg6: memref<1x32xf32, #tpu.memory_space<vmem>>, %arg7: memref<1x32xf32, #tpu.memory_space<vmem>>, %arg8: memref<16x32xf32, #tpu.memory_space<vmem>>) attributes {dimension_semantics = [#tpu.dimension_semantics<parallel>], iteration_bounds = array<i64: 1>, scalar_prefetch = 0 : i64, scratch_operands = 0 : i64, tpu.core_type = #tpu.core_type<tc>, window_params = [{pipeline_mode = #tpu.pipeline_mode<synchronous>, transform_indices = @transform_0, window_bounds = array<i64: 16, 8>}, {transform_indices = @transform_1, window_bounds = array<i64: 8, 32>}, {transform_indices = @transform_2, window_bounds = array<i64: 1, 32>}, {transform_indices = @transform_3, window_bounds = array<i64: 8, 32>}, {transform_indices = @transform_4, window_bounds = array<i64: 1, 32>}, {transform_indices = @transform_5, window_bounds = array<i64: 1, 32>}, {transform_indices = @transform_6, window_bounds = array<i64: 1, 32>}, {transform_indices = @transform_7, window_bounds = array<i64: 16, 32>}]} {
    %c0 = arith.constant 0 : index
    %c0_0 = arith.constant 0 : index
    %0 = vector.load %arg1[%c0, %c0_0] : memref<16x8xf32, #tpu.memory_space<vmem>>, vector<16x8xf32>
    %c0_1 = arith.constant 0 : index
    %c0_2 = arith.constant 0 : index
    %1 = vector.load %arg2[%c0_1, %c0_2] : memref<8x32xf32, #tpu.memory_space<vmem>>, vector<8x32xf32>
    %cst = arith.constant dense<0.000000e+00> : vector<16x32xf32>
    %2 = tpu.matmul %0, %1, %cst {dimension_numbers = #tpu.dot_dimension_numbers<[1], [0], [0], [1], [0, 0, 1, 1], [], []>} : vector<16x8xf32>, vector<8x32xf32>, vector<16x32xf32> -> vector<16x32xf32>
    %c0_3 = arith.constant 0 : index
    %c0_4 = arith.constant 0 : index
    %3 = vector.load %arg3[%c0_3, %c0_4] : memref<1x32xf32, #tpu.memory_space<vmem>>, vector<1x32xf32>
    %4 = vector.broadcast %3 : vector<1x32xf32> to vector<16x32xf32>
    %5 = arith.addf %2, %4 : vector<16x32xf32>
    %c0_5 = arith.constant 0 : index
    %c0_6 = arith.constant 0 : index
    %6 = vector.load %arg4[%c0_5, %c0_6] : memref<8x32xf32, #tpu.memory_space<vmem>>, vector<8x32xf32>
    %cst_7 = arith.constant dense<0.000000e+00> : vector<16x32xf32>
    %7 = tpu.matmul %0, %6, %cst_7 {dimension_numbers = #tpu.dot_dimension_numbers<[1], [0], [0], [1], [0, 0, 1, 1], [], []>} : vector<16x8xf32>, vector<8x32xf32>, vector<16x32xf32> -> vector<16x32xf32>
    %c0_8 = arith.constant 0 : index
    %c0_9 = arith.constant 0 : index
    %8 = vector.load %arg5[%c0_8, %c0_9] : memref<1x32xf32, #tpu.memory_space<vmem>>, vector<1x32xf32>
    %9 = vector.broadcast %8 : vector<1x32xf32> to vector<16x32xf32>
    %10 = arith.addf %7, %9 : vector<16x32xf32>
    %cst_10 = arith.constant dense<0.000000e+00> : vector<32xf32>
    %11 = vector.multi_reduction <add>, %10, %cst_10 [0] : vector<16x32xf32> to vector<32xf32>
    %12 = vector.shape_cast %11 : vector<32xf32> to vector<1x32xf32>
    %cst_11 = arith.constant 1.600000e+01 : f32
    %13 = vector.broadcast %cst_11 : f32 to vector<1x32xf32>
    %14 = arith.divf %12, %13 : vector<1x32xf32>
    %15 = vector.broadcast %14 : vector<1x32xf32> to vector<16x32xf32>
    %16 = arith.subf %10, %15 : vector<16x32xf32>
    %17 = vector.broadcast %14 : vector<1x32xf32> to vector<16x32xf32>
    %18 = arith.subf %10, %17 : vector<16x32xf32>
    %19 = arith.mulf %16, %18 : vector<16x32xf32>
    %cst_12 = arith.constant dense<0.000000e+00> : vector<32xf32>
    %20 = vector.multi_reduction <add>, %19, %cst_12 [0] : vector<16x32xf32> to vector<32xf32>
    %21 = vector.shape_cast %20 : vector<32xf32> to vector<1x32xf32>
    %cst_13 = arith.constant 1.600000e+01 : f32
    %22 = vector.broadcast %cst_13 : f32 to vector<1x32xf32>
    %23 = arith.divf %21, %22 : vector<1x32xf32>
    %24 = vector.broadcast %14 : vector<1x32xf32> to vector<16x32xf32>
    %25 = arith.subf %10, %24 : vector<16x32xf32>
    %cst_14 = arith.constant 9.99999974E-6 : f32
    %26 = vector.broadcast %cst_14 : f32 to vector<1x32xf32>
    %27 = arith.addf %23, %26 : vector<1x32xf32>
    %28 = math.rsqrt %27 : vector<1x32xf32>
    %29 = vector.broadcast %28 : vector<1x32xf32> to vector<16x32xf32>
    %30 = arith.mulf %25, %29 : vector<16x32xf32>
    %c0_15 = arith.constant 0 : index
    %c0_16 = arith.constant 0 : index
    %31 = vector.load %arg6[%c0_15, %c0_16] : memref<1x32xf32, #tpu.memory_space<vmem>>, vector<1x32xf32>
    %32 = vector.broadcast %31 : vector<1x32xf32> to vector<16x32xf32>
    %33 = arith.mulf %30, %32 : vector<16x32xf32>
    %c0_17 = arith.constant 0 : index
    %c0_18 = arith.constant 0 : index
    %34 = vector.load %arg7[%c0_17, %c0_18] : memref<1x32xf32, #tpu.memory_space<vmem>>, vector<1x32xf32>
    %35 = vector.broadcast %34 : vector<1x32xf32> to vector<16x32xf32>
    %36 = arith.addf %33, %35 : vector<16x32xf32>
    %cst_19 = arith.constant 0.000000e+00 : f32
    %37 = vector.broadcast %cst_19 : f32 to vector<16x32xf32>
    %38 = arith.maximumf %36, %37 : vector<16x32xf32>
    %39 = arith.mulf %5, %38 : vector<16x32xf32>
    %c0_20 = arith.constant 0 : index
    %c0_21 = arith.constant 0 : index
    %40 = vector.load %arg8[%c0_20, %c0_21] : memref<16x32xf32, #tpu.memory_space<vmem>>, vector<16x32xf32>
    tpu.vector_store %arg8[%c0_20, %c0_21], %39 {strides = array<i32>} : memref<16x32xf32, #tpu.memory_space<vmem>>, vector<16x32xf32>,
    return
  }
  func.func @transform_0(%arg0: i32) -> (i32, i32) {
    %c0_i32 = arith.constant 0 : i32
    %c0_i32_0 = arith.constant 0 : i32
    %c0_i32_1 = arith.constant 0 : i32
    return %c0_i32, %c0_i32_0 : i32, i32
  }
  func.func @transform_1(%arg0: i32) -> (i32, i32) {
    %c0_i32 = arith.constant 0 : i32
    %c0_i32_0 = arith.constant 0 : i32
    return %c0_i32, %arg0 : i32, i32
  }
  func.func @transform_2(%arg0: i32) -> (i32, i32) {
    %c0_i32 = arith.constant 0 : i32
    %c0_i32_0 = arith.constant 0 : i32
    return %c0_i32, %arg0 : i32, i32
  }
  func.func @transform_3(%arg0: i32) -> (i32, i32) {
    %c0_i32 = arith.constant 0 : i32
    %c0_i32_0 = arith.constant 0 : i32
    return %c0_i32, %arg0 : i32, i32
  }
  func.func @transform_4(%arg0: i32) -> (i32, i32) {
    %c0_i32 = arith.constant 0 : i32
    %c0_i32_0 = arith.constant 0 : i32
    return %c0_i32, %arg0 : i32, i32
  }
  func.func @transform_5(%arg0: i32) -> (i32, i32) {
    %c0_i32 = arith.constant 0 : i32
    %c0_i32_0 = arith.constant 0 : i32
    return %c0_i32, %arg0 : i32, i32
  }
  func.func @transform_6(%arg0: i32) -> (i32, i32) {
    %c0_i32 = arith.constant 0 : i32
    %c0_i32_0 = arith.constant 0 : i32
    return %c0_i32, %arg0 : i32, i32
  }
  func.func @transform_7(%arg0: i32) -> (i32, i32) {
    %c0_i32 = arith.constant 0 : i32
    %c0_i32_0 = arith.constant 0 : i32
    return %c0_i32, %arg0 : i32, i32
  }
}

</mosaic_0001>

<llo_original>
// kernel: tpu_custom_call.1
$region0: #{tpu_custom_call.1}
  #allocation0 [shape = 'u32[]', space=smem, size = 0x4, offset = 0x4, fixed_abs, tag = 'smem constant byte address 0x4 - core index']
  #allocation1 [shape = 'u32[144,128]{1,0:T(1,128)}', space=vmem, size = 0x12000, scoped, tag = 'internal scratch']
  %s0 = inlined_call_operand.vmem [shape: f32[16,8], index: 0, kind: input, shape index: {}]
  %s1 = inlined_call_operand.vmem [shape: f32[8,32], index: 1, kind: input, shape index: {}]
  %s2 = inlined_call_operand.vmem [shape: f32[1,32], index: 2, kind: input, shape index: {}]
  %s3 = inlined_call_operand.vmem [shape: f32[8,32], index: 3, kind: input, shape index: {}]
  %s4 = inlined_call_operand.vmem [shape: f32[1,32], index: 4, kind: input, shape index: {}]
  %s5 = inlined_call_operand.vmem [shape: f32[1,32], index: 5, kind: input, shape index: {}]
  %s6 = inlined_call_operand.vmem [shape: f32[1,32], index: 6, kind: input, shape index: {}]
  %s7 = inlined_call_operand.hbm [shape: f32[16,32], index: 7, kind: output, shape index: {}]
  %s8 = sld [smem:[#allocation0]]
  $region38: #{tpu_custom_call.1} parent=0
    _
  %s10 = ssub.s32 1, %s8
  %s11 = scalar_select 0, %s10, %s8
  $region1: #{tpu_custom_call.1} parent=0
    #allocation2 [shape = 'u8[8192]{0}', space=vmem, size = 0x2000, scoped, tag = 'output window, operand 0, single buffered']
    #allocation3 [shape = 's32[1]{0}', space=sflag, size = 0x4, scoped, tag = 'scoped memory for tpu_custom_call.1']
    %12 = vsyncpa [#allocation3], 0
    // Predicated region
    $region2: #{tpu_custom_call.1} parent=1 // pred_check
      _
    $region3: #{tpu_custom_call.1} parent=1 // pred_check_branch
      %14 = sbr.rel (0) target = $region5
    $region4: #{tpu_custom_call.1} parent=1 // pred_region
      _
    $region5: #{tpu_custom_call.1} parent=1 // pred_fallthru
      _
    // Predicated region
    $region6: #{tpu_custom_call.1} parent=1 // pred_check
      _
    $region7: #{tpu_custom_call.1} parent=1 // pred_check_branch
      %16 = sbr.rel (0) target = $region9
    $region8: #{tpu_custom_call.1} parent=1 // pred_region
      _
    $region9: #{tpu_custom_call.1} parent=1 // pred_fallthru
      _
    // Predicated region
    $region10: #{tpu_custom_call.1} parent=1 // pred_check
      _
    $region11: #{tpu_custom_call.1} parent=1 // pred_check_branch
      %18 = sbr.rel (0) target = $region13
    $region12: #{tpu_custom_call.1} parent=1 // pred_region
      _
    $region13: #{tpu_custom_call.1} parent=1 // pred_fallthru
      _
    // Predicated region
    $region14: #{tpu_custom_call.1} parent=1 // pred_check
      _
    $region15: #{tpu_custom_call.1} parent=1 // pred_check_branch
      %20 = sbr.rel (0) target = $region17
    $region16: #{tpu_custom_call.1} parent=1 // pred_region
      _
    $region17: #{tpu_custom_call.1} parent=1 // pred_fallthru
      _
    // Predicated region
    $region18: #{tpu_custom_call.1} parent=1 // pred_check
      _
    $region19: #{tpu_custom_call.1} parent=1 // pred_check_branch
      %22 = sbr.rel (0) target = $region21
    $region20: #{tpu_custom_call.1} parent=1 // pred_region
      _
    $region21: #{tpu_custom_call.1} parent=1 // pred_fallthru
      _
    // Predicated region
    $region22: #{tpu_custom_call.1} parent=1 // pred_check
      _
    $region23: #{tpu_custom_call.1} parent=1 // pred_check_branch
      %24 = sbr.rel (0) target = $region25
    $region24: #{tpu_custom_call.1} parent=1 // pred_region
      _
    $region25: #{tpu_custom_call.1} parent=1 // pred_fallthru
      _
    // Predicated region
    $region26: #{tpu_custom_call.1} parent=1 // pred_check
      _
    $region27: #{tpu_custom_call.1} parent=1 // pred_check_branch
      %26 = sbr.rel (0) target = $region29
    $region28: #{tpu_custom_call.1} parent=1 // pred_region
      _
    $region29: #{tpu_custom_call.1} parent=1 // pred_fallthru
      _
    %v27 = vld [vmem:[%s0] sm:$0xff]
    %v28 = vld [vmem:[%s0 + $0x8] sm:$0xff]
    %v29 = vld [vmem:[%s1] sm:$0xff]
    %v30 = vld [vmem:[%s2] sm:$0x1]
    %v32 = vlaneseq
    %v33 = vshrl.u32 %v32, 7
    %v34 = vsub.s32 0, %v33
    %v35 = vrot.slane %v30, %v34
    %vm37 = vcmask 64512
    %v39 = vsel %vm37, %v27, 0
    %v42 = vsel %vm37, %v28, 0
    %44 = vmatprep.subr.mxu0 0.0
    %45 = vmatpush1.msra.mxu0 0.0
    %46 = vmatprep.subr.mxu0 0.0
    %47 = vmatpush1.msra.mxu0 0.0
    %48 = vmatprep.subr.mxu0 0.0
    %49 = vmatpush1.msra.mxu0 0.0
    %50 = vmatprep.subr.mxu0 0.0
    %51 = vmatpush1.msra.mxu0 0.0
    %52 = vmatprep.subr.mxu0 0.0
    %53 = vmatpush1.msra.mxu0 0.0
    %54 = vmatprep.subr.mxu0 0.0
    %55 = vmatpush1.msra.mxu0 0.0
    %56 = vmatprep.subr.mxu0 0.0
    %57 = vmatpush1.msra.mxu0 0.0
    %58 = vmatprep.subr.mxu0 0.0
    %59 = vmatpush1.msra.mxu0 0.0
    %60 = vmatprep.subr.mxu0 0.0
    %61 = vmatpush1.msra.mxu0 0.0
    %62 = vmatprep.subr.mxu0 0.0
    %63 = vmatpush1.msra.mxu0 0.0
    %64 = vmatprep.subr.mxu0 0.0
    %65 = vmatpush1.msra.mxu0 0.0
    %66 = vmatprep.subr.mxu0 0.0
    %67 = vmatpush1.msra.mxu0 0.0
    %68 = vmatprep.subr.mxu0 0.0
    %69 = vmatpush1.msra.mxu0 0.0
    %70 = vmatprep.subr.mxu0 0.0
    %71 = vmatpush1.msra.mxu0 0.0
    %72 = vmatprep.subr.mxu0 0.0
    %73 = vmatpush1.msra.mxu0 0.0
    %74 = vmatprep.subr.mxu0 0.0
    %75 = vmatpush1.msra.mxu0 %v29
    %76 = vmatprep.subr.mxu0 0.0
    %77 = vmatpush2.msra.mxu0 0.0
    %78 = vmatprep.subr.mxu0 0.0
    %79 = vmatpush2.msra.mxu0 0.0
    %80 = vmatprep.subr.mxu0 0.0
    %81 = vmatpush2.msra.mxu0 0.0
    %82 = vmatprep.subr.mxu0 0.0
    %83 = vmatpush2.msra.mxu0 0.0
    %84 = vmatprep.subr.mxu0 0.0
    %85 = vmatpush2.msra.mxu0 0.0
    %86 = vmatprep.subr.mxu0 0.0
    %87 = vmatpush2.msra.mxu0 0.0
    %88 = vmatprep.subr.mxu0 0.0
    %89 = vmatpush2.msra.mxu0 0.0
    %90 = vmatprep.subr.mxu0 0.0
    %91 = vmatpush2.msra.mxu0 0.0
    %92 = vmatprep.subr.mxu0 0.0
    %93 = vmatpush2.msra.mxu0 0.0
    %94 = vmatprep.subr.mxu0 0.0
    %95 = vmatpush2.msra.mxu0 0.0
    %96 = vmatprep.subr.mxu0 0.0
    %97 = vmatpush2.msra.mxu0 0.0
    %98 = vmatprep.subr.mxu0 0.0
    %99 = vmatpush2.msra.mxu0 0.0
    %100 = vmatprep.subr.mxu0 0.0
    %101 = vmatpush2.msra.mxu0 0.0
    %102 = vmatprep.subr.mxu0 0.0
    %103 = vmatpush2.msra.mxu0 0.0
    %104 = vmatprep.subr.mxu0 0.0
    %105 = vmatpush2.msra.mxu0 0.0
    %106 = vmatprep.subr.mxu0 0.0
    %107 = vmatpush2.msra.mxu0 0.0
    %108 = vmatprep.mubr.f32.mxu0 0.0
    %109 = vmatmul.mubr.f32.gmra.mxu0 %v39
    %v110 = vpop.f32.mrf.mxu0
    %v111 = vadd.f32 %v35, %v110
    %v112 = vpop.f32.mrf.mxu0
    %113 = vmatprep.mubr.f32.mxu0 0.0
    %114 = vmatmul.mubr.f32.gmra.mxu0 %v42
    %v115 = vpop.f32.mrf.mxu0
    %v116 = vadd.f32 %v35, %v115
    %v117 = vpop.f32.mrf.mxu0
    %118 = vdwg.mxu0
    %v119 = vld [vmem:[%s3] sm:$0xff]
    %v120 = vld [vmem:[%s4] sm:$0x1]
    %v122 = vlaneseq
    %v123 = vshrl.u32 %v122, 7
    %v124 = vsub.s32 0, %v123
    %v125 = vrot.slane %v120, %v124
    %127 = vmatprep.subr.mxu0 0.0
    %128 = vmatpush1.msra.mxu0 0.0
    %129 = vmatprep.subr.mxu0 0.0
    %130 = vmatpush1.msra.mxu0 0.0
    %131 = vmatprep.subr.mxu0 0.0
    %132 = vmatpush1.msra.mxu0 0.0
    %133 = vmatprep.subr.mxu0 0.0
    %134 = vmatpush1.msra.mxu0 0.0
    %135 = vmatprep.subr.mxu0 0.0
    %136 = vmatpush1.msra.mxu0 0.0
    %137 = vmatprep.subr.mxu0 0.0
    %138 = vmatpush1.msra.mxu0 0.0
    %139 = vmatprep.subr.mxu0 0.0
    %140 = vmatpush1.msra.mxu0 0.0
    %141 = vmatprep.subr.mxu0 0.0
    %142 = vmatpush1.msra.mxu0 0.0
    %143 = vmatprep.subr.mxu0 0.0
    %144 = vmatpush1.msra.mxu0 0.0
    %145 = vmatprep.subr.mxu0 0.0
    %146 = vmatpush1.msra.mxu0 0.0
    %147 = vmatprep.subr.mxu0 0.0
    %148 = vmatpush1.msra.mxu0 0.0
    %149 = vmatprep.subr.mxu0 0.0
    %150 = vmatpush1.msra.mxu0 0.0
    %151 = vmatprep.subr.mxu0 0.0
    %152 = vmatpush1.msra.mxu0 0.0
    %153 = vmatprep.subr.mxu0 0.0
    %154 = vmatpush1.msra.mxu0 0.0
    %155 = vmatprep.subr.mxu0 0.0
    %156 = vmatpush1.msra.mxu0 0.0
    %157 = vmatprep.subr.mxu0 0.0
    %158 = vmatpush1.msra.mxu0 %v119
    %159 = vmatprep.subr.mxu0 0.0
    %160 = vmatpush2.msra.mxu0 0.0
    %161 = vmatprep.subr.mxu0 0.0
    %162 = vmatpush2.msra.mxu0 0.0
    %163 = vmatprep.subr.mxu0 0.0
    %164 = vmatpush2.msra.mxu0 0.0
    %165 = vmatprep.subr.mxu0 0.0
    %166 = vmatpush2.msra.mxu0 0.0
    %167 = vmatprep.subr.mxu0 0.0
    %168 = vmatpush2.msra.mxu0 0.0
    %169 = vmatprep.subr.mxu0 0.0
    %170 = vmatpush2.msra.mxu0 0.0
    %171 = vmatprep.subr.mxu0 0.0
    %172 = vmatpush2.msra.mxu0 0.0
    %173 = vmatprep.subr.mxu0 0.0
    %174 = vmatpush2.msra.mxu0 0.0
    %175 = vmatprep.subr.mxu0 0.0
    %176 = vmatpush2.msra.mxu0 0.0
    %177 = vmatprep.subr.mxu0 0.0
    %178 = vmatpush2.msra.mxu0 0.0
    %179 = vmatprep.subr.mxu0 0.0
    %180 = vmatpush2.msra.mxu0 0.0
    %181 = vmatprep.subr.mxu0 0.0
    %182 = vmatpush2.msra.mxu0 0.0
    %183 = vmatprep.subr.mxu0 0.0
    %184 = vmatpush2.msra.mxu0 0.0
    %185 = vmatprep.subr.mxu0 0.0
    %186 = vmatpush2.msra.mxu0 0.0
    %187 = vmatprep.subr.mxu0 0.0
    %188 = vmatpush2.msra.mxu0 0.0
    %189 = vmatprep.subr.mxu0 0.0
    %190 = vmatpush2.msra.mxu0 0.0
    %191 = vmatprep.mubr.f32.mxu0 0.0
    %192 = vmatmul.mubr.f32.gmra.mxu0 %v39
    %v193 = vpop.f32.mrf.mxu0
    %v194 = vadd.f32 %v125, %v193
    %v195 = vpop.f32.mrf.mxu0
    %196 = vmatprep.mubr.f32.mxu0 0.0
    %197 = vmatmul.mubr.f32.gmra.mxu0 %v42
    %v198 = vpop.f32.mrf.mxu0
    %v199 = vadd.f32 %v125, %v198
    %v200 = vpop.f32.mrf.mxu0
    %201 = vdwg.mxu0
    %vm202 = vcmask 261120
    %v203 = vsel %vm202, %v194, 0.0
    %v204 = vsel %vm202, %v199, 0.0
    %v205 = vadd.f32 %v203, %v204
    %v206 = vrot.slane %v205, 4
    %v207 = vadd.f32 %v205, %v206
    %v208 = vrot.slane %v207, 2
    %v209 = vadd.f32 %v207, %v208
    %v210 = vrot.slane %v209, 1
    %v211 = vadd.f32 %v209, %v210
    %v212 = vrcp.pop 16.0
    %v213 = vmul.f32 %v211, %v212
    %v214 = vsub.f32 %v194, %v213
    %v215 = vsub.f32 %v199, %v213
    %v216 = vmul.f32 %v214, %v214
    %v217 = vmul.f32 %v215, %v215
    %v218 = vsel %vm202, %v216, 0.0
    %v219 = vsel %vm202, %v217, 0.0
    %v220 = vadd.f32 %v218, %v219
    %v221 = vrot.slane %v220, 4
    %v222 = vadd.f32 %v220, %v221
    %v223 = vrot.slane %v222, 2
    %v224 = vadd.f32 %v222, %v223
    %v225 = vrot.slane %v224, 1
    %v226 = vadd.f32 %v224, %v225
    %v227 = vmul.f32 %v226, %v212
    %v228 = vadd.f32 %v227, 1e-05
    %v229 = vrsqrt.pop %v228
    %v230 = vmul.f32 %v214, %v229
    %v231 = vmul.f32 %v215, %v229
    %v232 = vld [vmem:[%s5] sm:$0x1]
    %v234 = vlaneseq
    %v235 = vshrl.u32 %v234, 7
    %v236 = vsub.s32 0, %v235
    %v237 = vrot.slane %v232, %v236
    %v239 = vmul.f32 %v230, %v237
    %v240 = vmul.f32 %v231, %v237
    %v241 = vld [vmem:[%s6] sm:$0x1]
    %v243 = vlaneseq
    %v244 = vshrl.u32 %v243, 7
    %v245 = vsub.s32 0, %v244
    %v246 = vrot.slane %v241, %v245
    %v248 = vadd.f32 %v239, %v246
    %v249 = vadd.f32 %v240, %v246
    %v250 = vmax.f32 %v248, 0.0
    %v251 = vmax.f32 %v249, 0.0
    %v252 = vmul.f32 %v111, %v250
    %v253 = vmul.f32 %v116, %v251
    %254 = vst.msk [vmem:[#allocation2] sm:$0xff] %vm202, %v252
    %255 = vst.msk [vmem:[#allocation2 + $0x8] sm:$0xff] %vm202, %v253
    // Predicated region
    $region30: #{tpu_custom_call.1} parent=1 // pred_check
      _
    $region31: #{tpu_custom_call.1} parent=1 // pred_check_branch
      %257 = sbr.rel (0) target = $region33
    $region32: #{tpu_custom_call.1} parent=1 // pred_region
      %s259 = ssub.s32 256, 256
      %260 = vsyncadd [#allocation3], %s259
      %s261 = sshll.u32 [#allocation2], 4
      %s262 = int_to_ptr.vmem [resolvable:$true] %s261
      %267 = dma.vmem_to_hbm [thread:$0]  %s262, 256, %s7, [#allocation3], 128, 128, 8
    $region33: #{tpu_custom_call.1} parent=1 // pred_fallthru
      _
    // Predicated region
    $region34: #{tpu_custom_call.1} parent=1 // pred_check
      _
    $region35: #{tpu_custom_call.1} parent=1 // pred_check_branch
      %269 = sbr.rel (0) target = $region37
    $region36: #{tpu_custom_call.1} parent=1 // pred_region
      %270 = dma.done [#allocation3], 256
    $region37: #{tpu_custom_call.1} parent=1 // pred_fallthru
      _
    %271 = vsyncpa [#allocation3], 1

</llo_original>
